<compile_context>
chip_gen: v7x
topology: tpu7x:2x2x1
jax: 0.10.0
libtpu: 0.0.40
codegen_flags: <defaults>
</compile_context>

<pallas_src>
import jax
import jax.numpy as jnp
from jax import lax
from jax.experimental import pallas as pl
from jax.experimental.pallas import tpu as pltpu


def _round_up(x, mult):
    return ((x + mult - 1) // mult) * mult


def _pick_slab(tm_eff):
    # largest M-slab (multiple of 8) that divides the row-tile
    for s in (256, 128, 64, 32, 16, 8):
        if tm_eff % s == 0:
            return s
    return tm_eff


def _vmem_capacity_bytes():
    try:
        info = pltpu.get_tpu_info()
        for attr in ("vmem_capacity_bytes", "vmem_bytes", "vmem_size_bytes"):
            v = getattr(info, attr, None)
            if v:
                return int(v)
    except Exception:
        pass
    try:
        if "v7" in jax.devices()[0].device_kind.lower():
            return 64 << 20
    except Exception:
        pass
    return 128 << 20


def _make_sse_kernel(m, n, tm, tn, slab, mask_rows, mask_cols):
    n_slabs = tm // slab

    def kernel(x_ref, yt_ref, t_ref, out_ref):
        i = pl.program_id(0)
        j = pl.program_id(1)

        @pl.when(j == 0)
        def _():
            out_ref[...] = jnp.zeros_like(out_ref)

        y_tile = yt_ref[...]  # (rp, tn) f32, lane-dense MXU RHS

        # Edge masks only when the tile grid overhangs the (unpadded) target.
        col_valid = None
        if mask_cols:
            cols = j * tn + lax.broadcasted_iota(jnp.int32, (slab, tn), 1)
            col_valid = cols < n
        row_iota = (lax.broadcasted_iota(jnp.int32, (slab, tn), 0)
                    if mask_rows else None)

        def slab_body(s, acc):
            row0 = pl.multiple_of(s * slab, slab)
            xs = x_ref[pl.ds(row0, slab), :]                        # (slab, rp)
            pred = jnp.dot(xs, y_tile, preferred_element_type=jnp.float32)
            tgt = t_ref[pl.ds(row0, slab), :].astype(jnp.float32)   # (slab, tn)
            diff = pred - tgt
            if mask_rows or mask_cols:
                valid = None
                if mask_rows:
                    valid = (row_iota + (i * tm + row0)) < m
                if mask_cols:
                    valid = col_valid if valid is None else (valid & col_valid)
                diff = jnp.where(valid, diff, 0.0)
            d2 = diff * diff
            # sublane-split, layout-preserving reduction -> lane-dense (8, tn)
            return acc + jnp.sum(d2.reshape(slab // 8, 8, tn), axis=0)

        acc = lax.fori_loop(0, n_slabs, slab_body,
                            jnp.zeros((8, tn), jnp.float32), unroll=True)
        out_ref[...] += acc

    return kernel


def lowrank_mse_loss(X, Y, target, mask, *, tm=None, tn=None):
    m, r = X.shape
    n, r2 = Y.shape
    assert r == r2
    assert target.shape == (m, n) and mask.shape == (m, n)

    # ---- generation-aware tile / VMEM defaults -----------------------------
    vmem_cap = _vmem_capacity_bytes()
    if vmem_cap <= (64 << 20):      # v7x: 64 MiB VMEM per TensorCore
        tm_def, tn_def, vmem_cap_limit = 512, 4096, 52 << 20
    else:                           # v5e / v6e: 128 MiB VMEM
        tm_def, tn_def, vmem_cap_limit = 1024, 4096, 104 << 20
    tm = tm_def if tm is None else tm
    tn = tn_def if tn is None else tn

    rp = _round_up(max(r, 1), 8)
    tm_eff = min(tm, _round_up(m, 8))          # multiple of 8
    if m >= 16:
        # keep grid_m >= 2 so the "parallel" i axis can feed both v7x
        # TensorCores (harmless extra grid step on single-TC v5e/v6e)
        tm_eff = min(tm_eff, _round_up((m + 1) // 2, 8))
    tn_eff = min(tn, _round_up(n, 128))        # multiple of 128

    grid_m = pl.cdiv(m, tm_eff)
    grid_n = pl.cdiv(n, tn_eff)
    mp = grid_m * tm_eff
    np_ = grid_n * tn_eff

    # Only the tiny factors are padded (exact: zero rows/cols contribute 0 to
    # the SSE).  The big target matrix is NOT padded/copied in HBM; its ragged
    # edge is masked in-kernel.
    Xp = jnp.pad(X.astype(jnp.float32), ((0, mp - m), (0, rp - r)))
    Ytp = jnp.pad(Y.astype(jnp.float32), ((0, np_ - n), (0, rp - r))).T  # (rp, np_)

    mask_rows = mp != m
    mask_cols = np_ != n
    slab = _pick_slab(tm_eff)

    kernel = _make_sse_kernel(m, n, tm_eff, tn_eff, slab, mask_rows, mask_cols)

    # VMEM budget: double-buffered target tile + slab temporaries + lane-padded
    # X tiles + lane-dense Yt tiles + output partials, with slack.
    t_item = target.dtype.itemsize
    need = (2 * tm_eff * tn_eff * t_item       # double-buffered target tile
            + 3 * slab * tn_eff * 4            # pred/diff/d2 slab temporaries
            + 2 * tm_eff * 128 * 4             # X tiles (rp lanes pad to 128)
            + 2 * 8 * tn_eff * 4               # Yt tiles
            + 2 * 8 * tn_eff * 4)              # output partial tiles
    vmem_limit = int(min(vmem_cap_limit, max(need + (8 << 20), 32 << 20)))

    cost = pl.CostEstimate(
        flops=2 * mp * np_ * rp + 3 * m * n,
        transcendentals=0,
        bytes_accessed=(
            target.size * t_item               # target streamed exactly once
            + Xp.size * 4                      # X fetched once per row block
            + Ytp.size * 4 * grid_m            # Yt re-fetched per row block
            + grid_m * 8 * tn_eff * 4          # partial-sum outputs
        ),
    )

    partials = pl.pallas_call(
        kernel,
        out_shape=jax.ShapeDtypeStruct((grid_m * 8, tn_eff), jnp.float32),
        grid_spec=pltpu.PrefetchScalarGridSpec(
            num_scalar_prefetch=0,
            grid=(grid_m, grid_n),
            in_specs=[
                pl.BlockSpec((tm_eff, rp), lambda i, j: (i, 0)),       # X rows
                pl.BlockSpec((rp, tn_eff), lambda i, j: (0, j)),       # Y^T lane-dense
                pl.BlockSpec((tm_eff, tn_eff), lambda i, j: (i, j)),   # target
            ],
            out_specs=pl.BlockSpec((8, tn_eff), lambda i, j: (i, 0)),
        ),
        compiler_params=pltpu.CompilerParams(
            dimension_semantics=("parallel", "arbitrary"),
            vmem_limit_bytes=vmem_limit,
        ),
        cost_estimate=cost,
    )(Xp, Ytp, target)

    sse = jnp.sum(partials)
    # Mask only feeds the scalar denominator, exactly like the reference
    # module: sum((X @ Y.T - target)**2) / mask.sum()  (unmasked numerator).
    return sse / jnp.sum(mask.astype(jnp.float32))


if __name__ == "__main__":
    # Shapes match the PyTorch module defaults: m=500, n=250, r=5.
    m, n, r = 500, 250, 5

    key = jax.random.PRNGKey(0)
    kx, ky, kt, km = jax.random.split(key, 4)

    # uniform(-1, 1) parameters, mirroring torch .uniform_(-1, 1)
    X = jax.random.uniform(kx, (m, r), jnp.float32, minval=-1.0, maxval=1.0)
    Y = jax.random.uniform(ky, (n, r), jnp.float32, minval=-1.0, maxval=1.0)

    target = jax.random.normal(kt, (m, n), jnp.float32)
    mask = (jax.random.uniform(km, (m, n)) > 0.5).astype(jnp.float32)

    loss = lowrank_mse_loss(X, Y, target, mask)
    loss = jax.block_until_ready(loss)

    # reference check in plain JAX
    ref = jnp.sum((X @ Y.T - target) ** 2) / jnp.sum(mask)
    assert jnp.allclose(loss, ref, rtol=1e-4, atol=1e-4), (loss, ref)

    print("KERNEL_OK")
</pallas_src>

<mosaic_0001>
module attributes {stable_mosaic.version = 11 : i64} {
  func.func @kernel(%arg0: i32, %arg1: i32, %arg2: memref<256x8xf32, #tpu.memory_space<vmem>>, %arg3: memref<8x256xf32, #tpu.memory_space<vmem>>, %arg4: memref<256x256xf32, #tpu.memory_space<vmem>>, %arg5: memref<8x256xf32, #tpu.memory_space<vmem>>) attributes {dimension_semantics = [#tpu.dimension_semantics<parallel>, #tpu.dimension_semantics<arbitrary>], iteration_bounds = array<i64: 2, 1>, scalar_prefetch = 0 : i64, scratch_operands = 0 : i64, tpu.core_type = #tpu.core_type<tc>, window_params = [{transform_indices = @transform_0, window_bounds = array<i64: 256, 8>}, {transform_indices = @transform_1, window_bounds = array<i64: 8, 256>}, {transform_indices = @transform_2, window_bounds = array<i64: 256, 256>}, {transform_indices = @transform_3, window_bounds = array<i64: 8, 256>}]} {
    %c0_i32 = arith.constant 0 : i32
    %0 = arith.cmpi eq, %arg1, %c0_i32 : i32
    %1 = arith.extui %0 : i1 to i32
    %c0_i32_0 = arith.constant 0 : i32
    %2 = arith.cmpi ne, %1, %c0_i32_0 : i32
    scf.if %2 {
      %cst_14 = arith.constant 0.000000e+00 : f32
      %36 = vector.broadcast %cst_14 : f32 to vector<8x256xf32>
      %c0_15 = arith.constant 0 : index
      %c0_16 = arith.constant 0 : index
      %37 = vector.load %arg5[%c0_15, %c0_16] : memref<8x256xf32, #tpu.memory_space<vmem>>, vector<8x256xf32>
      tpu.vector_store %arg5[%c0_15, %c0_16], %36 {strides = array<i32>} : memref<8x256xf32, #tpu.memory_space<vmem>>, vector<8x256xf32>,
    } else {
    }
    %c0 = arith.constant 0 : index
    %c0_1 = arith.constant 0 : index
    %3 = vector.load %arg3[%c0, %c0_1] : memref<8x256xf32, #tpu.memory_space<vmem>>, vector<8x256xf32>
    %c256_i32 = arith.constant 256 : i32
    %4 = arith.muli %arg1, %c256_i32 : i32
    %5 = tpu.iota {dimensions = array<i32: 1>} : vector<256x256xi32>
    %6 = vector.broadcast %4 : i32 to vector<256x256xi32>
    %7 = arith.addi %6, %5 : vector<256x256xi32>
    %c250_i32 = arith.constant 250 : i32
    %8 = vector.broadcast %c250_i32 : i32 to vector<256x256xi32>
    %9 = arith.cmpi slt, %7, %8 : vector<256x256xi32>
    %10 = tpu.iota {dimensions = array<i32: 0>} : vector<256x256xi32>
    %cst = arith.constant 0.000000e+00 : f32
    %11 = vector.broadcast %cst : f32 to vector<8x256xf32>
    %c0_i32_2 = arith.constant 0 : i32
    %c256_i32_3 = arith.constant 256 : i32
    %12 = arith.muli %c0_i32_2, %c256_i32_3 : i32
    %13 = tpu.assume_multiple %12, 256 : i32
    %14 = arith.index_cast %13 : i32 to index
    %c0_4 = arith.constant 0 : index
    %15 = vector.load %arg2[%14, %c0_4] : memref<256x8xf32, #tpu.memory_space<vmem>>, vector<256x8xf32>
    %cst_5 = arith.constant dense<0.000000e+00> : vector<256x256xf32>
    %16 = tpu.matmul %15, %3, %cst_5 {dimension_numbers = #tpu.dot_dimension_numbers<[1], [0], [0], [1], [0, 0, 1, 1], [], []>} : vector<256x8xf32>, vector<8x256xf32>, vector<256x256xf32> -> vector<256x256xf32>
    %17 = arith.index_cast %13 : i32 to index
    %c0_6 = arith.constant 0 : index
    %18 = vector.load %arg4[%17, %c0_6] : memref<256x256xf32, #tpu.memory_space<vmem>>, vector<256x256xf32>
    %19 = arith.subf %16, %18 : vector<256x256xf32>
    %c256_i32_7 = arith.constant 256 : i32
    %20 = arith.muli %arg0, %c256_i32_7 : i32
    %21 = arith.addi %20, %13 : i32
    %22 = vector.broadcast %21 : i32 to vector<256x256xi32>
    %23 = arith.addi %10, %22 : vector<256x256xi32>
    %c500_i32 = arith.constant 500 : i32
    %24 = vector.broadcast %c500_i32 : i32 to vector<256x256xi32>
    %25 = arith.cmpi slt, %23, %24 : vector<256x256xi32>
    %26 = arith.andi %25, %9 : vector<256x256xi1>
    %cst_8 = arith.constant 0.000000e+00 : f32
    %27 = vector.broadcast %cst_8 : f32 to vector<256x256xf32>
    %28 = arith.select %26, %19, %27 : vector<256x256xi1>, vector<256x256xf32>
    %29 = arith.mulf %28, %28 : vector<256x256xf32>
    %30 = vector.shape_cast %29 : vector<256x256xf32> to vector<32x8x256xf32>
    %cst_9 = arith.constant dense<0.000000e+00> : vector<8x256xf32>
    %31 = vector.multi_reduction <add>, %30, %cst_9 [0] : vector<32x8x256xf32> to vector<8x256xf32>
    %32 = arith.addf %11, %31 : vector<8x256xf32>
    %c1_i32 = arith.constant 1 : i32
    %c0_10 = arith.constant 0 : index
    %c0_11 = arith.constant 0 : index
    %33 = vector.load %arg5[%c0_10, %c0_11] : memref<8x256xf32, #tpu.memory_space<vmem>>, vector<8x256xf32>
    %34 = arith.addf %33, %32 : vector<8x256xf32>
    %c0_12 = arith.constant 0 : index
    %c0_13 = arith.constant 0 : index
    %35 = vector.load %arg5[%c0_12, %c0_13] : memref<8x256xf32, #tpu.memory_space<vmem>>, vector<8x256xf32>
    tpu.vector_store %arg5[%c0_12, %c0_13], %34 {strides = array<i32>} : memref<8x256xf32, #tpu.memory_space<vmem>>, vector<8x256xf32>,
    return
  }
  func.func @transform_0(%arg0: i32, %arg1: i32) -> (i32, i32) {
    %c0_i32 = arith.constant 0 : i32
    %c0_i32_0 = arith.constant 0 : i32
    return %arg0, %c0_i32 : i32, i32
  }
  func.func @transform_1(%arg0: i32, %arg1: i32) -> (i32, i32) {
    %c0_i32 = arith.constant 0 : i32
    %c0_i32_0 = arith.constant 0 : i32
    return %c0_i32, %arg1 : i32, i32
  }
  func.func @transform_2(%arg0: i32, %arg1: i32) -> (i32, i32) {
    %c0_i32 = arith.constant 0 : i32
    return %arg0, %arg1 : i32, i32
  }
  func.func @transform_3(%arg0: i32, %arg1: i32) -> (i32, i32) {
    %c0_i32 = arith.constant 0 : i32
    %c0_i32_0 = arith.constant 0 : i32
    return %arg0, %c0_i32 : i32, i32
  }
}

</mosaic_0001>

<llo_original>
// kernel: tpu_custom_call.1
$region0: #{tpu_custom_call.1}
  #allocation0 [shape = 'u32[]', space=smem, size = 0x4, offset = 0x4, fixed_abs, tag = 'smem constant byte address 0x4 - core index']
  #allocation1 [shape = 'u32[144,128]{1,0:T(1,128)}', space=vmem, size = 0x12000, scoped, tag = 'internal scratch']
  %s0 = inlined_call_operand.vmem [shape: f32[512,8], index: 0, kind: input, shape index: {}]
  %s1 = inlined_call_operand.vmem [shape: f32[8,256], index: 1, kind: input, shape index: {}]
  %s2 = inlined_call_operand.hbm [shape: f32[500,250], index: 2, kind: input, shape index: {}]
  %s3 = inlined_call_operand.hbm [shape: f32[16,256], index: 3, kind: output, shape index: {}]
  %s4 = sld [smem:[#allocation0]]
  $region53: #{tpu_custom_call.1} parent=0
    _
  %s6 = ssub.s32 1, %s4
  %s7 = scalar_select 0, %s6, %s4
  $region1: #{tpu_custom_call.1} parent=0
    #allocation2 [shape = 'u8[524288]{0}', space=vmem, size = 0x80000, scoped, tag = 'input window, operand 2']
    #allocation3 [shape = 's32[2]{0}', space=sflag, size = 0x8, scoped, tag = 'scoped memory for tpu_custom_call.1']
    #allocation4 [shape = 's32[2]{0}', space=sflag, size = 0x8, scoped, tag = 'scoped memory for tpu_custom_call.1']
    #allocation5 [shape = 'u8[16384]{0}', space=vmem, size = 0x4000, scoped, tag = 'output window, operand 0']
    %8 = vsyncpa [#allocation3], 0
    %s9 = scalar_lea.sflag [#allocation3], 1
    %10 = vsyncpa %s9, 0
    %11 = vsyncpa [#allocation4], 0
    %s12 = scalar_lea.sflag [#allocation4], 1
    %13 = vsyncpa %s12, 0
    loop: start=0, step=1, limit=4
    $region2: #{tpu_custom_call.1} parent=1 // loop_pre_header
      _
    $region3: #{tpu_custom_call.1} parent=1 // loop_header
      %s15 = sphi 0, %s19
      %p16 = scmp.ge.s32.totalorder %s15, 4
      %s22 = sphi 0, %s34
      %s23 = sphi 0, %s30
      %s24 = sphi 0, %s22
      %s25 = sphi 0, %s23
      %s26 = sphi 0, %s24
      %s27 = sphi 0, %s25
      %s37 = sphi 0, %s39
      %s40 = sphi 0, %s37
      %s41 = sphi 0, %s40
      %s57 = sphi 0, %s41
      %s63 = sphi 0, %s65
      %s66 = sphi 0, %s63
      %s67 = sphi 0, %s66
      %s83 = sphi 0, %s67
      %s91 = sphi 0, %s93
      %s94 = sphi 0, %s91
      %s95 = sphi 0, %s94
      %s111 = sphi 0, %s95
      %s117 = sphi 0, %s119
      %s120 = sphi 0, %s117
      %s121 = sphi 0, %s120
      %s137 = sphi 0, %s121
    $region4: #{tpu_custom_call.1} parent=1 // loop_header_branch
      %18 = sbr.rel (%p16) target = $region8
    $region5: #{tpu_custom_call.1} parent=1 // loop_body
      %s20 = ssub.s32 %s15, 1
      %s21 = ssub.s32 %s15, 2
      %s28 = sadd.s32 1, %s23
      %p29 = scmp.ge.s32.totalorder %s28, 1
      %s30 = scalar_select %p29, 0, %s28
      %s31 = sadd.s32 1, %s22
      %s32 = scalar_select %p29, %s31, %s22
      %p33 = scmp.ge.s32.totalorder %s32, 2
      %s34 = scalar_select %p33, 0, %s32
      %s35 = ssub.s32 %s22, %s34
      %p36 = scmp.eq.s32.totalorder %s35, 0
      %s38 = sadd.s32 %s37, 1
      %s39 = scalar_select %p36, %s37, %s38
      %p42 = pneg %p36
      %p43 = scmp.eq.s32.totalorder %s15, 1
      %p44 = por %p42, %p43
      %p45 = scmp.ne.s32.totalorder %s37, %s40
      %p46 = scmp.eq.s32.totalorder %s15, 0
      %p47 = por %p45, %p46
      %p48 = scmp.ne.s32.totalorder %s37, %s40
      %p49 = scmp.eq.s32.totalorder %s20, 1
      %p50 = por %p48, %p49
      %p51 = scmp.ne.s32.totalorder %s40, %s41
      %p52 = scmp.eq.s32.totalorder %s20, 0
      %p53 = por %p51, %p52
      %p54 = scmp.ne.s32.totalorder %s40, %s41
      %p55 = scmp.eq.s32.totalorder %s21, 1
      %p56 = por %p54, %p55
      %p58 = scmp.ne.s32.totalorder %s41, %s57
      %p59 = scmp.eq.s32.totalorder %s21, 0
      %p60 = por %p58, %p59
      %s61 = ssub.s32 %s23, %s30
      %p62 = scmp.eq.s32.totalorder %s61, 0
      %s64 = sadd.s32 %s63, 1
      %s65 = scalar_select %p62, %s63, %s64
      %p68 = pneg %p62
      %p69 = scmp.eq.s32.totalorder %s15, 1
      %p70 = por %p68, %p69
      %p71 = scmp.ne.s32.totalorder %s63, %s66
      %p72 = scmp.eq.s32.totalorder %s15, 0
      %p73 = por %p71, %p72
      %p74 = scmp.ne.s32.totalorder %s63, %s66
      %p75 = scmp.eq.s32.totalorder %s20, 1
      %p76 = por %p74, %p75
      %p77 = scmp.ne.s32.totalorder %s66, %s67
      %p78 = scmp.eq.s32.totalorder %s20, 0
      %p79 = por %p77, %p78
      %p80 = scmp.ne.s32.totalorder %s66, %s67
      %p81 = scmp.eq.s32.totalorder %s21, 1
      %p82 = por %p80, %p81
      %p84 = scmp.ne.s32.totalorder %s67, %s83
      %p85 = scmp.eq.s32.totalorder %s21, 0
      %p86 = por %p84, %p85
      %s87 = ssub.s32 %s22, %s34
      %s88 = ssub.s32 %s23, %s30
      %s89 = sor.u32 %s87, %s88
      %p90 = scmp.eq.s32.totalorder %s89, 0
      %s92 = sadd.s32 %s91, 1
      %s93 = scalar_select %p90, %s91, %s92
      %p96 = pneg %p90
      %p97 = scmp.eq.s32.totalorder %s15, 1
      %p98 = por %p96, %p97
      %p99 = scmp.ne.s32.totalorder %s91, %s94
      %p100 = scmp.eq.s32.totalorder %s15, 0
      %p101 = por %p99, %p100
      %p102 = scmp.ne.s32.totalorder %s91, %s94
      %p103 = scmp.eq.s32.totalorder %s20, 1
      %p104 = por %p102, %p103
      %p105 = scmp.ne.s32.totalorder %s94, %s95
      %p106 = scmp.eq.s32.totalorder %s20, 0
      %p107 = por %p105, %p106
      %p108 = scmp.ne.s32.totalorder %s94, %s95
      %p109 = scmp.eq.s32.totalorder %s21, 1
      %p110 = por %p108, %p109
      %p112 = scmp.ne.s32.totalorder %s95, %s111
      %p113 = scmp.eq.s32.totalorder %s21, 0
      %p114 = por %p112, %p113
      %s115 = ssub.s32 %s22, %s34
      %p116 = scmp.eq.s32.totalorder %s115, 0
      %s118 = sadd.s32 %s117, 1
      %s119 = scalar_select %p116, %s117, %s118
      %p122 = pneg %p116
      %p123 = scmp.eq.s32.totalorder %s15, 1
      %p124 = por %p122, %p123
      %p125 = scmp.ne.s32.totalorder %s117, %s120
      %p126 = scmp.eq.s32.totalorder %s15, 0
      %p127 = por %p125, %p126
      %p128 = scmp.ne.s32.totalorder %s117, %s120
      %p129 = scmp.eq.s32.totalorder %s20, 1
      %p130 = por %p128, %p129
      %p131 = scmp.ne.s32.totalorder %s120, %s121
      %p132 = scmp.eq.s32.totalorder %s20, 0
      %p133 = por %p131, %p132
      %p134 = scmp.ne.s32.totalorder %s120, %s121
      %p135 = scmp.eq.s32.totalorder %s21, 1
      %p136 = por %p134, %p135
      %p138 = scmp.ne.s32.totalorder %s121, %s137
      %p139 = scmp.eq.s32.totalorder %s21, 0
      %p140 = por %p138, %p139
      %p141 = scmp.le.s32.totalorder 1, %s15
      %p142 = scmp.lt.s32.totalorder %s15, 3
      %p143 = pnand %p141, %p142
      %p144 = pneg %p143
      // Predicated region
      $region9: #{tpu_custom_call.1} parent=5 // pred_check
        _
      $region10: #{tpu_custom_call.1} parent=5 // pred_check_branch
        %146 = sbr.rel (%p143) target = $region12
      $region11: #{tpu_custom_call.1} parent=5 // pred_region
        %s147 = ssub.s32 %s15, 1
        // Predicated region
        $region13: #{tpu_custom_call.1} parent=11 // pred_check
          %p148 = pneg %p79
        $region14: #{tpu_custom_call.1} parent=11 // pred_check_branch
          %150 = sbr.rel (%p148) target = $region16
        $region15: #{tpu_custom_call.1} parent=11 // pred_region
          %s151 = smul.u32 2, %s25
          %p152 = scmp.lt.s32.totalorder %s151, 1
          %s153 = scalar_select %p152, %s151, 1
          %s154 = smul.addr %s153, 8
          %s155 = scalar_lea.vmem %s1, %s154
          %s156 = smul.u32 2, %s25
        $region16: #{tpu_custom_call.1} parent=11 // pred_fallthru
          _
      $region12: #{tpu_custom_call.1} parent=5 // pred_fallthru
        _
      %p157 = scmp.lt.s32.totalorder %s15, 2
      // Predicated region
      $region17: #{tpu_custom_call.1} parent=5 // pred_check
        %p158 = pneg %p157
      $region18: #{tpu_custom_call.1} parent=5 // pred_check_branch
        %160 = sbr.rel (%p158) target = $region20
      $region19: #{tpu_custom_call.1} parent=5 // pred_region
        // Predicated region
        $region21: #{tpu_custom_call.1} parent=19 // pred_check
          %p161 = pneg %p47
        $region22: #{tpu_custom_call.1} parent=19 // pred_check_branch
          %163 = sbr.rel (%p161) target = $region24
        $region23: #{tpu_custom_call.1} parent=19 // pred_region
          %s164 = smul.u32 32, %s22
          %p165 = scmp.lt.s32.totalorder %s164, 63
          %s166 = scalar_select %p165, %s164, 63
          %s167 = smul.addr %s166, 8
          %s168 = scalar_lea.vmem %s0, %s167
          %s169 = smul.u32 32, %s22
        $region24: #{tpu_custom_call.1} parent=19 // pred_fallthru
          _
        // Predicated region
        $region25: #{tpu_custom_call.1} parent=19 // pred_check
          %p170 = pneg %p101
        $region26: #{tpu_custom_call.1} parent=19 // pred_check_branch
          %172 = sbr.rel (%p170) target = $region28
        $region27: #{tpu_custom_call.1} parent=19 // pred_region
          %s173 = sand.u32 %s91, 1
          %s174 = scalar_lea.sflag [#allocation3], %s173
          %s175 = sand.u32 %s91, 1
          %s176 = smul.addr %s175, 512
          %s177 = scalar_lea.vmem [#allocation2], %s176
          %s178 = smul.u32 32, %s22
          %s179 = smul.u32 2, %s23
          %s180 = ssub.s32 63, %s178
          %p181 = scmp.lt.s32.totalorder %s180, 32
          %s182 = scalar_select %p181, %s180, 32
          %s183 = smul.u32 128, %s182
          %s184 = smul.u32 %s183, 2
          %s186 = ssub.s32 8192, %s184
          %187 = vsyncadd %s174, %s186
          %p188 = scmp.ne.s32.totalorder 0, %s184
          %s189 = smul.addr %s178, 2
          %s190 = sadd.s32 %s179, %s189
          %s191 = smul.addr %s190, 128
          %s192 = scalar_lea.hbm %s2, %s191
          %s193 = smul.u32 16, %s182
          %s194 = sshll.u32 %s177, 4
          %s195 = int_to_ptr.vmem [resolvable:$true] %s194
          %s196 = sshll.u32 %s193, 4
          %200 = dma.hbm_to_vmem [thread:$0]  (%p188), %s192, %s196, %s195, %s174, 256, 256, 16
        $region28: #{tpu_custom_call.1} parent=19 // pred_fallthru
          _
      $region20: #{tpu_custom_call.1} parent=5 // pred_fallthru
        _
      %p201 = scmp.le.s32.totalorder 1, %s15
      %p202 = scmp.lt.s32.totalorder %s15, 3
      %p203 = pnand %p201, %p202
      %p204 = pneg %p203
      // Predicated region
      $region29: #{tpu_custom_call.1} parent=5 // pred_check
        _
      $region30: #{tpu_custom_call.1} parent=5 // pred_check_branch
        %206 = sbr.rel (%p203) target = $region32
      $region31: #{tpu_custom_call.1} parent=5 // pred_region
        %s207 = ssub.s32 %s15, 1
        %s208 = sand.u32 %s94, 1
        %s209 = scalar_lea.sflag [#allocation3], %s208
        %s210 = sand.u32 %s94, 1
        %s211 = smul.addr %s210, 512
        %s212 = scalar_lea.vmem [#allocation2], %s211
        // Predicated region
        $region33: #{tpu_custom_call.1} parent=31 // pred_check
          %p213 = pneg %p107
        $region34: #{tpu_custom_call.1} parent=31 // pred_check_branch
          %215 = sbr.rel (%p213) target = $region36
        $region35: #{tpu_custom_call.1} parent=31 // pred_region
          %216 = dma.done %s209, 8192
        $region36: #{tpu_custom_call.1} parent=31 // pred_fallthru
          _
        %s217 = smul.u32 32, %s24
        %p218 = scmp.lt.s32.totalorder %s217, 63
        %s219 = scalar_select %p218, %s217, 63
        %s220 = smul.addr %s219, 8
        %s221 = scalar_lea.vmem %s0, %s220
        %p222 = pneg %p53
        %p223 = pneg %p50
        %s224 = smul.u32 2, %s25
        %p225 = scmp.lt.s32.totalorder %s224, 1
        %s226 = scalar_select %p225, %s224, 1
        %s227 = smul.addr %s226, 8
        %s228 = scalar_lea.vmem %s1, %s227
        %p229 = pneg %p79
        %p230 = pneg %p76
        %s231 = sand.u32 %s94, 1
        %s232 = scalar_lea.sflag [#allocation3], %s231
        %s233 = sand.u32 %s94, 1
        %s234 = smul.addr %s233, 512
        %s235 = scalar_lea.vmem [#allocation2], %s234
        %p236 = pneg %p107
        %p237 = pneg %p104
        %p238 = pneg %p133
        %p239 = pneg %p130
        %s240 = sand.u32 %s120, 1
        %s241 = scalar_lea.sflag [#allocation4], %s240
        %s242 = sand.u32 %s120, 1
        %s243 = smul.addr %s242, 16
        %s244 = scalar_lea.vmem [#allocation5], %s243
        %s245 = smul.u32 32, %s24
        %p246 = scmp.lt.s32.totalorder %s245, 63
        %s247 = scalar_select %p246, %s245, 63
        %s248 = smul.addr %s247, 8
        %s249 = scalar_lea.vmem %s0, %s248
        %s250 = smul.u32 32, %s24
        %s251 = smul.u32 2, %s25
        %p252 = scmp.lt.s32.totalorder %s251, 1
        %s253 = scalar_select %p252, %s251, 1
        %s254 = smul.addr %s253, 8
        %s255 = scalar_lea.vmem %s1, %s254
        %s256 = smul.u32 2, %s25
        %s257 = smul.u32 32, %s24
        %s258 = smul.u32 2, %s25
        %s259 = ssub.s32 63, %s257
        %p260 = scmp.lt.s32.totalorder %s259, 32
        %s261 = scalar_select %p260, %s259, 32
        %s262 = smul.u32 128, %s261
        %s263 = smul.u32 %s262, 2
        %p264 = scmp.eq.s32.totalorder %s25, 0
        // Predicated region
        $region37: #{tpu_custom_call.1} parent=31 // pred_check
          %p265 = pneg %p264
        $region38: #{tpu_custom_call.1} parent=31 // pred_check_branch
          %267 = sbr.rel (%p265) target = $region40
        $region39: #{tpu_custom_call.1} parent=31 // pred_region
          %268 = vst [vmem:[%s244] sm:$0xff] 0.0
          %269 = vst [vmem:[%s244 + $0x8] sm:$0xff] 0.0
        $region40: #{tpu_custom_call.1} parent=31 // pred_fallthru
          _
        %v270 = vld [vmem:[%s255] sm:$0xff]
        %v271 = vld [vmem:[%s255 + $0x8] sm:$0xff]
        %s272 = smul.u32 %s25, 256
        %v273 = vlaneseq
        %v274 = vand.u32 %v273, 127
        %v275 = vadd.s32 %v274, 128
        %v276 = vstv %s272
        %v277 = vadd.s32 %v276, %v274
        %v278 = vadd.s32 %v276, %v275
        %vm279 = vcmp.lt.s32.totalorder %v277, 250
        %vm280 = vcmp.lt.s32.totalorder %v278, 250
        %v281 = vlaneseq
        %v282 = vshrl.u32 %v281, 7
        %v283 = vadd.s32 %v282, 8
        %v284 = vadd.s32 %v282, 16
        %v285 = vadd.s32 %v282, 24
        %v286 = vadd.s32 %v282, 32
        %v287 = vadd.s32 %v282, 40
        %v288 = vadd.s32 %v282, 48
        %v289 = vadd.s32 %v282, 56
        %v290 = vadd.s32 %v282, 64
        %v291 = vadd.s32 %v282, 72
        %v292 = vadd.s32 %v282, 80
        %v293 = vadd.s32 %v282, 88
        %v294 = vadd.s32 %v282, 96
        %v295 = vadd.s32 %v282, 104
        %v296 = vadd.s32 %v282, 112
        %v297 = vadd.s32 %v282, 120
        %v298 = vadd.s32 %v282, 128
        %v299 = vadd.s32 %v282, 136
        %v300 = vadd.s32 %v282, 144
        %v301 = vadd.s32 %v282, 152
        %v302 = vadd.s32 %v282, 160
        %v303 = vadd.s32 %v282, 168
        %v304 = vadd.s32 %v282, 176
        %v305 = vadd.s32 %v282, 184
        %v306 = vadd.s32 %v282, 192
        %v307 = vadd.s32 %v282, 200
        %v308 = vadd.s32 %v282, 208
        %v309 = vadd.s32 %v282, 216
        %v310 = vadd.s32 %v282, 224
        %v311 = vadd.s32 %v282, 232
        %v312 = vadd.s32 %v282, 240
        %v313 = vadd.s32 %v282, 248
        %v314 = vld [vmem:[%s249] sm:$0xff]
        %v315 = vld [vmem:[%s249 + $0x8] sm:$0xff]
        %v316 = vld [vmem:[%s249 + $0x10] sm:$0xff]
        %v317 = vld [vmem:[%s249 + $0x18] sm:$0xff]
        %v318 = vld [vmem:[%s249 + $0x20] sm:$0xff]
        %v319 = vld [vmem:[%s249 + $0x28] sm:$0xff]
        %v320 = vld [vmem:[%s249 + $0x30] sm:$0xff]
        %v321 = vld [vmem:[%s249 + $0x38] sm:$0xff]
        %v322 = vld [vmem:[%s249 + $0x40] sm:$0xff]
        %v323 = vld [vmem:[%s249 + $0x48] sm:$0xff]
        %v324 = vld [vmem:[%s249 + $0x50] sm:$0xff]
        %v325 = vld [vmem:[%s249 + $0x58] sm:$0xff]
        %v326 = vld [vmem:[%s249 + $0x60] sm:$0xff]
        %v327 = vld [vmem:[%s249 + $0x68] sm:$0xff]
        %v328 = vld [vmem:[%s249 + $0x70] sm:$0xff]
        %v329 = vld [vmem:[%s249 + $0x78] sm:$0xff]
        %v330 = vld [vmem:[%s249 + $0x80] sm:$0xff]
        %v331 = vld [vmem:[%s249 + $0x88] sm:$0xff]
        %v332 = vld [vmem:[%s249 + $0x90] sm:$0xff]
        %v333 = vld [vmem:[%s249 + $0x98] sm:$0xff]
        %v334 = vld [vmem:[%s249 + $0xa0] sm:$0xff]
        %v335 = vld [vmem:[%s249 + $0xa8] sm:$0xff]
        %v336 = vld [vmem:[%s249 + $0xb0] sm:$0xff]
        %v337 = vld [vmem:[%s249 + $0xb8] sm:$0xff]
        %v338 = vld [vmem:[%s249 + $0xc0] sm:$0xff]
        %v339 = vld [vmem:[%s249 + $0xc8] sm:$0xff]
        %v340 = vld [vmem:[%s249 + $0xd0] sm:$0xff]
        %v341 = vld [vmem:[%s249 + $0xd8] sm:$0xff]
        %v342 = vld [vmem:[%s249 + $0xe0] sm:$0xff]
        %v343 = vld [vmem:[%s249 + $0xe8] sm:$0xff]
        %v344 = vld [vmem:[%s249 + $0xf0] sm:$0xff]
        %v345 = vld [vmem:[%s249 + $0xf8] sm:$0xff]
        %vm346 = vcmask 64512
        %v348 = vsel %vm346, %v314, 0
        %v351 = vsel %vm346, %v315, 0
        %v354 = vsel %vm346, %v316, 0
        %v357 = vsel %vm346, %v317, 0
        %v360 = vsel %vm346, %v318, 0
        %v363 = vsel %vm346, %v319, 0
        %v366 = vsel %vm346, %v320, 0
        %v369 = vsel %vm346, %v321, 0
        %v372 = vsel %vm346, %v322, 0
        %v375 = vsel %vm346, %v323, 0
        %v378 = vsel %vm346, %v324, 0
        %v381 = vsel %vm346, %v325, 0
        %v384 = vsel %vm346, %v326, 0
        %v387 = vsel %vm346, %v327, 0
        %v390 = vsel %vm346, %v328, 0
        %v393 = vsel %vm346, %v329, 0
        %v396 = vsel %vm346, %v330, 0
        %v399 = vsel %vm346, %v331, 0
        %v402 = vsel %vm346, %v332, 0
        %v405 = vsel %vm346, %v333, 0
        %v408 = vsel %vm346, %v334, 0
        %v411 = vsel %vm346, %v335, 0
        %v414 = vsel %vm346, %v336, 0
        %v417 = vsel %vm346, %v337, 0
        %v420 = vsel %vm346, %v338, 0
        %v423 = vsel %vm346, %v339, 0
        %v426 = vsel %vm346, %v340, 0
        %v429 = vsel %vm346, %v341, 0
        %v432 = vsel %vm346, %v342, 0
        %v435 = vsel %vm346, %v343, 0
        %v438 = vsel %vm346, %v344, 0
        %v441 = vsel %vm346, %v345, 0
        %443 = vmatprep.subr.mxu0 %v271
        %444 = vmatpush1.msra.mxu0 %v270
        %445 = vmatprep.subr.mxu0 0.0
        %446 = vmatpush1.msra.mxu0 0.0
        %447 = vmatprep.subr.mxu0 0.0
        %448 = vmatpush1.msra.mxu0 0.0
        %449 = vmatprep.subr.mxu0 0.0
        %450 = vmatpush1.msra.mxu0 0.0
        %451 = vmatprep.subr.mxu0 0.0
        %452 = vmatpush1.msra.mxu0 0.0
        %453 = vmatprep.subr.mxu0 0.0
        %454 = vmatpush1.msra.mxu0 0.0
        %455 = vmatprep.subr.mxu0 0.0
        %456 = vmatpush1.msra.mxu0 0.0
        %457 = vmatprep.subr.mxu0 0.0
        %458 = vmatpush1.msra.mxu0 0.0
        %459 = vmatprep.subr.mxu0 0.0
        %460 = vmatpush1.msra.mxu0 0.0
        %461 = vmatprep.subr.mxu0 0.0
        %462 = vmatpush1.msra.mxu0 0.0
        %463 = vmatprep.subr.mxu0 0.0
        %464 = vmatpush1.msra.mxu0 0.0
        %465 = vmatprep.subr.mxu0 0.0
        %466 = vmatpush1.msra.mxu0 0.0
        %467 = vmatprep.subr.mxu0 0.0
        %468 = vmatpush1.msra.mxu0 0.0
        %469 = vmatprep.subr.mxu0 0.0
        %470 = vmatpush1.msra.mxu0 0.0
        %471 = vmatprep.subr.mxu0 0.0
        %472 = vmatpush1.msra.mxu0 0.0
        %473 = vmatprep.subr.mxu0 0.0
        %474 = vmatpush1.msra.mxu0 0.0
        %475 = vmatprep.subr.mxu0 0.0
        %476 = vmatpush1.msra.mxu0 0.0
        %477 = vmatprep.subr.mxu0 0.0
        %478 = vmatpush1.msra.mxu0 0.0
        %479 = vmatprep.subr.mxu0 0.0
        %480 = vmatpush1.msra.mxu0 0.0
        %481 = vmatprep.subr.mxu0 0.0
        %482 = vmatpush1.msra.mxu0 0.0
        %483 = vmatprep.subr.mxu0 0.0
        %484 = vmatpush1.msra.mxu0 0.0
        %485 = vmatprep.subr.mxu0 0.0
        %486 = vmatpush1.msra.mxu0 0.0
        %487 = vmatprep.subr.mxu0 0.0
        %488 = vmatpush1.msra.mxu0 0.0
        %489 = vmatprep.subr.mxu0 0.0
        %490 = vmatpush1.msra.mxu0 0.0
        %491 = vmatprep.subr.mxu0 0.0
        %492 = vmatpush1.msra.mxu0 0.0
        %493 = vmatprep.subr.mxu0 0.0
        %494 = vmatpush1.msra.mxu0 0.0
        %495 = vmatprep.subr.mxu0 0.0
        %496 = vmatpush1.msra.mxu0 0.0
        %497 = vmatprep.subr.mxu0 0.0
        %498 = vmatpush1.msra.mxu0 0.0
        %499 = vmatprep.subr.mxu0 0.0
        %500 = vmatpush1.msra.mxu0 0.0
        %501 = vmatprep.subr.mxu0 0.0
        %502 = vmatpush1.msra.mxu0 0.0
        %503 = vmatprep.subr.mxu0 0.0
        %504 = vmatpush1.msra.mxu0 0.0
        %505 = vmatprep.subr.mxu0 0.0
        %506 = vmatpush1.msra.mxu0 0.0
        %507 = vmatprep.mubr.f32.mxu0 0.0
        %508 = vmatmul.mubr.f32.gmra.mrb[0].mxu0 %v348
        %v509 = vpop.f32.mrb[0].mxu0
        %v510 = vadd.f32 0.0, %v509
        %v511 = vpop.f32.mrb[0].mxu0
        %v512 = vadd.f32 0.0, %v511
        %513 = vmatprep.mubr.f32.mxu0 0.0
        %514 = vmatmul.mubr.f32.gmra.mrb[0].mxu0 %v351
        %v515 = vpop.f32.mrb[0].mxu0
        %v516 = vadd.f32 0.0, %v515
        %v517 = vpop.f32.mrb[0].mxu0
        %v518 = vadd.f32 0.0, %v517
        %519 = vmatprep.mubr.f32.mxu0 0.0
        %520 = vmatmul.mubr.f32.gmra.mrb[0].mxu0 %v354
        %v521 = vpop.f32.mrb[0].mxu0
        %v522 = vadd.f32 0.0, %v521
        %v523 = vpop.f32.mrb[0].mxu0
        %v524 = vadd.f32 0.0, %v523
        %525 = vmatprep.mubr.f32.mxu0 0.0
        %526 = vmatmul.mubr.f32.gmra.mrb[0].mxu0 %v357
        %v527 = vpop.f32.mrb[0].mxu0
        %v528 = vadd.f32 0.0, %v527
        %v529 = vpop.f32.mrb[0].mxu0
        %v530 = vadd.f32 0.0, %v529
        %531 = vmatprep.mubr.f32.mxu0 0.0
        %532 = vmatmul.mubr.f32.gmra.mrb[0].mxu0 %v360
        %v533 = vpop.f32.mrb[0].mxu0
        %v534 = vadd.f32 0.0, %v533
        %v535 = vpop.f32.mrb[0].mxu0
        %v536 = vadd.f32 0.0, %v535
        %537 = vmatprep.mubr.f32.mxu0 0.0
        %538 = vmatmul.mubr.f32.gmra.mrb[0].mxu0 %v363
        %v539 = vpop.f32.mrb[0].mxu0
        %v540 = vadd.f32 0.0, %v539
        %v541 = vpop.f32.mrb[0].mxu0
        %v542 = vadd.f32 0.0, %v541
        %543 = vmatprep.mubr.f32.mxu0 0.0
        %544 = vmatmul.mubr.f32.gmra.mrb[0].mxu0 %v366
        %v545 = vpop.f32.mrb[0].mxu0
        %v546 = vadd.f32 0.0, %v545
        %v547 = vpop.f32.mrb[0].mxu0
        %v548 = vadd.f32 0.0, %v547
        %549 = vmatprep.mubr.f32.mxu0 0.0
        %550 = vmatmul.mubr.f32.gmra.mrb[0].mxu0 %v369
        %v551 = vpop.f32.mrb[0].mxu0
        %v552 = vadd.f32 0.0, %v551
        %v553 = vpop.f32.mrb[0].mxu0
        %v554 = vadd.f32 0.0, %v553
        %555 = vmatprep.mubr.f32.mxu0 0.0
        %556 = vmatmul.mubr.f32.gmra.mrb[0].mxu0 %v372
        %v557 = vpop.f32.mrb[0].mxu0
        %v558 = vadd.f32 0.0, %v557
        %v559 = vpop.f32.mrb[0].mxu0
        %v560 = vadd.f32 0.0, %v559
        %561 = vmatprep.mubr.f32.mxu0 0.0
        %562 = vmatmul.mubr.f32.gmra.mrb[0].mxu0 %v375
        %v563 = vpop.f32.mrb[0].mxu0
        %v564 = vadd.f32 0.0, %v563
        %v565 = vpop.f32.mrb[0].mxu0
        %v566 = vadd.f32 0.0, %v565
        %567 = vmatprep.mubr.f32.mxu0 0.0
        %568 = vmatmul.mubr.f32.gmra.mrb[0].mxu0 %v378
        %v569 = vpop.f32.mrb[0].mxu0
        %v570 = vadd.f32 0.0, %v569
        %v571 = vpop.f32.mrb[0].mxu0
        %v572 = vadd.f32 0.0, %v571
        %573 = vmatprep.mubr.f32.mxu0 0.0
        %574 = vmatmul.mubr.f32.gmra.mrb[0].mxu0 %v381
        %v575 = vpop.f32.mrb[0].mxu0
        %v576 = vadd.f32 0.0, %v575
        %v577 = vpop.f32.mrb[0].mxu0
        %v578 = vadd.f32 0.0, %v577
        %579 = vmatprep.mubr.f32.mxu0 0.0
        %580 = vmatmul.mubr.f32.gmra.mrb[0].mxu0 %v384
        %v581 = vpop.f32.mrb[0].mxu0
        %v582 = vadd.f32 0.0, %v581
        %v583 = vpop.f32.mrb[0].mxu0
        %v584 = vadd.f32 0.0, %v583
        %585 = vmatprep.mubr.f32.mxu0 0.0
        %586 = vmatmul.mubr.f32.gmra.mrb[0].mxu0 %v387
        %v587 = vpop.f32.mrb[0].mxu0
        %v588 = vadd.f32 0.0, %v587
        %v589 = vpop.f32.mrb[0].mxu0
        %v590 = vadd.f32 0.0, %v589
        %591 = vmatprep.mubr.f32.mxu0 0.0
        %592 = vmatmul.mubr.f32.gmra.mrb[0].mxu0 %v390
        %v593 = vpop.f32.mrb[0].mxu0
        %v594 = vadd.f32 0.0, %v593
        %v595 = vpop.f32.mrb[0].mxu0
        %v596 = vadd.f32 0.0, %v595
        %597 = vmatprep.mubr.f32.mxu0 0.0
        %598 = vmatmul.mubr.f32.gmra.mrb[0].mxu0 %v393
        %v599 = vpop.f32.mrb[0].mxu0
        %v600 = vadd.f32 0.0, %v599
        %v601 = vpop.f32.mrb[0].mxu0
        %v602 = vadd.f32 0.0, %v601
        %603 = vmatprep.mubr.f32.mxu0 0.0
        %604 = vmatmul.mubr.f32.gmra.mrb[0].mxu0 %v396
        %v605 = vpop.f32.mrb[0].mxu0
        %v606 = vadd.f32 0.0, %v605
        %v607 = vpop.f32.mrb[0].mxu0
        %v608 = vadd.f32 0.0, %v607
        %609 = vmatprep.mubr.f32.mxu0 0.0
        %610 = vmatmul.mubr.f32.gmra.mrb[0].mxu0 %v399
        %v611 = vpop.f32.mrb[0].mxu0
        %v612 = vadd.f32 0.0, %v611
        %v613 = vpop.f32.mrb[0].mxu0
        %v614 = vadd.f32 0.0, %v613
        %615 = vmatprep.mubr.f32.mxu0 0.0
        %616 = vmatmul.mubr.f32.gmra.mrb[0].mxu0 %v402
        %v617 = vpop.f32.mrb[0].mxu0
        %v618 = vadd.f32 0.0, %v617
        %v619 = vpop.f32.mrb[0].mxu0
        %v620 = vadd.f32 0.0, %v619
        %621 = vmatprep.mubr.f32.mxu0 0.0
        %622 = vmatmul.mubr.f32.gmra.mrb[0].mxu0 %v405
        %v623 = vpop.f32.mrb[0].mxu0
        %v624 = vadd.f32 0.0, %v623
        %v625 = vpop.f32.mrb[0].mxu0
        %v626 = vadd.f32 0.0, %v625
        %627 = vmatprep.mubr.f32.mxu0 0.0
        %628 = vmatmul.mubr.f32.gmra.mrb[0].mxu0 %v408
        %v629 = vpop.f32.mrb[0].mxu0
        %v630 = vadd.f32 0.0, %v629
        %v631 = vpop.f32.mrb[0].mxu0
        %v632 = vadd.f32 0.0, %v631
        %633 = vmatprep.mubr.f32.mxu0 0.0
        %634 = vmatmul.mubr.f32.gmra.mrb[0].mxu0 %v411
        %v635 = vpop.f32.mrb[0].mxu0
        %v636 = vadd.f32 0.0, %v635
        %v637 = vpop.f32.mrb[0].mxu0
        %v638 = vadd.f32 0.0, %v637
        %639 = vmatprep.mubr.f32.mxu0 0.0
        %640 = vmatmul.mubr.f32.gmra.mrb[0].mxu0 %v414
        %v641 = vpop.f32.mrb[0].mxu0
        %v642 = vadd.f32 0.0, %v641
        %v643 = vpop.f32.mrb[0].mxu0
        %v644 = vadd.f32 0.0, %v643
        %645 = vmatprep.mubr.f32.mxu0 0.0
        %646 = vmatmul.mubr.f32.gmra.mrb[0].mxu0 %v417
        %v647 = vpop.f32.mrb[0].mxu0
        %v648 = vadd.f32 0.0, %v647
        %v649 = vpop.f32.mrb[0].mxu0
        %v650 = vadd.f32 0.0, %v649
        %651 = vmatprep.mubr.f32.mxu0 0.0
        %652 = vmatmul.mubr.f32.gmra.mrb[0].mxu0 %v420
        %v653 = vpop.f32.mrb[0].mxu0
        %v654 = vadd.f32 0.0, %v653
        %v655 = vpop.f32.mrb[0].mxu0
        %v656 = vadd.f32 0.0, %v655
        %657 = vmatprep.mubr.f32.mxu0 0.0
        %658 = vmatmul.mubr.f32.gmra.mrb[0].mxu0 %v423
        %v659 = vpop.f32.mrb[0].mxu0
        %v660 = vadd.f32 0.0, %v659
        %v661 = vpop.f32.mrb[0].mxu0
        %v662 = vadd.f32 0.0, %v661
        %663 = vmatprep.mubr.f32.mxu0 0.0
        %664 = vmatmul.mubr.f32.gmra.mrb[0].mxu0 %v426
        %v665 = vpop.f32.mrb[0].mxu0
        %v666 = vadd.f32 0.0, %v665
        %v667 = vpop.f32.mrb[0].mxu0
        %v668 = vadd.f32 0.0, %v667
        %669 = vmatprep.mubr.f32.mxu0 0.0
        %670 = vmatmul.mubr.f32.gmra.mrb[0].mxu0 %v429
        %v671 = vpop.f32.mrb[0].mxu0
        %v672 = vadd.f32 0.0, %v671
        %v673 = vpop.f32.mrb[0].mxu0
        %v674 = vadd.f32 0.0, %v673
        %675 = vmatprep.mubr.f32.mxu0 0.0
        %676 = vmatmul.mubr.f32.gmra.mrb[0].mxu0 %v432
        %v677 = vpop.f32.mrb[0].mxu0
        %v678 = vadd.f32 0.0, %v677
        %v679 = vpop.f32.mrb[0].mxu0
        %v680 = vadd.f32 0.0, %v679
        %681 = vmatprep.mubr.f32.mxu0 0.0
        %682 = vmatmul.mubr.f32.gmra.mrb[0].mxu0 %v435
        %v683 = vpop.f32.mrb[0].mxu0
        %v684 = vadd.f32 0.0, %v683
        %v685 = vpop.f32.mrb[0].mxu0
        %v686 = vadd.f32 0.0, %v685
        %687 = vmatprep.mubr.f32.mxu0 0.0
        %688 = vmatmul.mubr.f32.gmra.mrb[0].mxu0 %v438
        %v689 = vpop.f32.mrb[0].mxu0
        %v690 = vadd.f32 0.0, %v689
        %v691 = vpop.f32.mrb[0].mxu0
        %v692 = vadd.f32 0.0, %v691
        %693 = vmatprep.mubr.f32.mxu0 0.0
        %694 = vmatmul.mubr.f32.gmra.mrb[0].mxu0 %v441
        %v695 = vpop.f32.mrb[0].mxu0
        %v696 = vadd.f32 0.0, %v695
        %v697 = vpop.f32.mrb[0].mxu0
        %v698 = vadd.f32 0.0, %v697
        %699 = vdwg.mxu0
        %s700 = smul.u32 0, 2
        %s701 = smul.addr %s700, 8
        %s702 = scalar_lea.vmem %s212, %s701 [#allocation2]
        %v703 = vld [vmem:[%s702] sm:$0xff]
        %v704 = vld [vmem:[%s702 + $0x8] sm:$0xff]
        %v705 = vld [vmem:[%s702 + $0x10] sm:$0xff]
        %v706 = vld [vmem:[%s702 + $0x18] sm:$0xff]
        %v707 = vld [vmem:[%s702 + $0x20] sm:$0xff]
        %v708 = vld [vmem:[%s702 + $0x28] sm:$0xff]
        %v709 = vld [vmem:[%s702 + $0x30] sm:$0xff]
        %v710 = vld [vmem:[%s702 + $0x38] sm:$0xff]
        %v711 = vld [vmem:[%s702 + $0x40] sm:$0xff]
        %v712 = vld [vmem:[%s702 + $0x48] sm:$0xff]
        %v713 = vld [vmem:[%s702 + $0x50] sm:$0xff]
        %v714 = vld [vmem:[%s702 + $0x58] sm:$0xff]
        %v715 = vld [vmem:[%s702 + $0x60] sm:$0xff]
        %v716 = vld [vmem:[%s702 + $0x68] sm:$0xff]
        %v717 = vld [vmem:[%s702 + $0x70] sm:$0xff]
        %v718 = vld [vmem:[%s702 + $0x78] sm:$0xff]
        %v719 = vld [vmem:[%s702 + $0x80] sm:$0xff]
        %v720 = vld [vmem:[%s702 + $0x88] sm:$0xff]
        %v721 = vld [vmem:[%s702 + $0x90] sm:$0xff]
        %v722 = vld [vmem:[%s702 + $0x98] sm:$0xff]
        %v723 = vld [vmem:[%s702 + $0xa0] sm:$0xff]
        %v724 = vld [vmem:[%s702 + $0xa8] sm:$0xff]
        %v725 = vld [vmem:[%s702 + $0xb0] sm:$0xff]
        %v726 = vld [vmem:[%s702 + $0xb8] sm:$0xff]
        %v727 = vld [vmem:[%s702 + $0xc0] sm:$0xff]
        %v728 = vld [vmem:[%s702 + $0xc8] sm:$0xff]
        %v729 = vld [vmem:[%s702 + $0xd0] sm:$0xff]
        %v730 = vld [vmem:[%s702 + $0xd8] sm:$0xff]
        %v731 = vld [vmem:[%s702 + $0xe0] sm:$0xff]
        %v732 = vld [vmem:[%s702 + $0xe8] sm:$0xff]
        %v733 = vld [vmem:[%s702 + $0xf0] sm:$0xff]
        %v734 = vld [vmem:[%s702 + $0xf8] sm:$0xff]
        %v735 = vld [vmem:[%s702 + $0x100] sm:$0xff]
        %v736 = vld [vmem:[%s702 + $0x108] sm:$0xff]
        %v737 = vld [vmem:[%s702 + $0x110] sm:$0xff]
        %v738 = vld [vmem:[%s702 + $0x118] sm:$0xff]
        %v739 = vld [vmem:[%s702 + $0x120] sm:$0xff]
        %v740 = vld [vmem:[%s702 + $0x128] sm:$0xff]
        %v741 = vld [vmem:[%s702 + $0x130] sm:$0xff]
        %v742 = vld [vmem:[%s702 + $0x138] sm:$0xff]
        %v743 = vld [vmem:[%s702 + $0x140] sm:$0xff]
        %v744 = vld [vmem:[%s702 + $0x148] sm:$0xff]
        %v745 = vld [vmem:[%s702 + $0x150] sm:$0xff]
        %v746 = vld [vmem:[%s702 + $0x158] sm:$0xff]
        %v747 = vld [vmem:[%s702 + $0x160] sm:$0xff]
        %v748 = vld [vmem:[%s702 + $0x168] sm:$0xff]
        %v749 = vld [vmem:[%s702 + $0x170] sm:$0xff]
        %v750 = vld [vmem:[%s702 + $0x178] sm:$0xff]
        %v751 = vld [vmem:[%s702 + $0x180] sm:$0xff]
        %v752 = vld [vmem:[%s702 + $0x188] sm:$0xff]
        %v753 = vld [vmem:[%s702 + $0x190] sm:$0xff]
        %v754 = vld [vmem:[%s702 + $0x198] sm:$0xff]
        %v755 = vld [vmem:[%s702 + $0x1a0] sm:$0xff]
        %v756 = vld [vmem:[%s702 + $0x1a8] sm:$0xff]
        %v757 = vld [vmem:[%s702 + $0x1b0] sm:$0xff]
        %v758 = vld [vmem:[%s702 + $0x1b8] sm:$0xff]
        %v759 = vld [vmem:[%s702 + $0x1c0] sm:$0xff]
        %v760 = vld [vmem:[%s702 + $0x1c8] sm:$0xff]
        %v761 = vld [vmem:[%s702 + $0x1d0] sm:$0xff]
        %v762 = vld [vmem:[%s702 + $0x1d8] sm:$0xff]
        %v763 = vld [vmem:[%s702 + $0x1e0] sm:$0xff]
        %v764 = vld [vmem:[%s702 + $0x1e8] sm:$0xff]
        %v765 = vld [vmem:[%s702 + $0x1f0] sm:$0xff]
        %v766 = vld [vmem:[%s702 + $0x1f8] sm:$0xff]
        %v767 = vsub.f32 %v510, %v703
        %v768 = vsub.f32 %v512, %v704
        %v769 = vsub.f32 %v516, %v705
        %v770 = vsub.f32 %v518, %v706
        %v771 = vsub.f32 %v522, %v707
        %v772 = vsub.f32 %v524, %v708
        %v773 = vsub.f32 %v528, %v709
        %v774 = vsub.f32 %v530, %v710
        %v775 = vsub.f32 %v534, %v711
        %v776 = vsub.f32 %v536, %v712
        %v777 = vsub.f32 %v540, %v713
        %v778 = vsub.f32 %v542, %v714
        %v779 = vsub.f32 %v546, %v715
        %v780 = vsub.f32 %v548, %v716
        %v781 = vsub.f32 %v552, %v717
        %v782 = vsub.f32 %v554, %v718
        %v783 = vsub.f32 %v558, %v719
        %v784 = vsub.f32 %v560, %v720
        %v785 = vsub.f32 %v564, %v721
        %v786 = vsub.f32 %v566, %v722
        %v787 = vsub.f32 %v570, %v723
        %v788 = vsub.f32 %v572, %v724
        %v789 = vsub.f32 %v576, %v725
        %v790 = vsub.f32 %v578, %v726
        %v791 = vsub.f32 %v582, %v727
        %v792 = vsub.f32 %v584, %v728
        %v793 = vsub.f32 %v588, %v729
        %v794 = vsub.f32 %v590, %v730
        %v795 = vsub.f32 %v594, %v731
        %v796 = vsub.f32 %v596, %v732
        %v797 = vsub.f32 %v600, %v733
        %v798 = vsub.f32 %v602, %v734
        %v799 = vsub.f32 %v606, %v735
        %v800 = vsub.f32 %v608, %v736
        %v801 = vsub.f32 %v612, %v737
        %v802 = vsub.f32 %v614, %v738
        %v803 = vsub.f32 %v618, %v739
        %v804 = vsub.f32 %v620, %v740
        %v805 = vsub.f32 %v624, %v741
        %v806 = vsub.f32 %v626, %v742
        %v807 = vsub.f32 %v630, %v743
        %v808 = vsub.f32 %v632, %v744
        %v809 = vsub.f32 %v636, %v745
        %v810 = vsub.f32 %v638, %v746
        %v811 = vsub.f32 %v642, %v747
        %v812 = vsub.f32 %v644, %v748
        %v813 = vsub.f32 %v648, %v749
        %v814 = vsub.f32 %v650, %v750
        %v815 = vsub.f32 %v654, %v751
        %v816 = vsub.f32 %v656, %v752
        %v817 = vsub.f32 %v660, %v753
        %v818 = vsub.f32 %v662, %v754
        %v819 = vsub.f32 %v666, %v755
        %v820 = vsub.f32 %v668, %v756
        %v821 = vsub.f32 %v672, %v757
        %v822 = vsub.f32 %v674, %v758
        %v823 = vsub.f32 %v678, %v759
        %v824 = vsub.f32 %v680, %v760
        %v825 = vsub.f32 %v684, %v761
        %v826 = vsub.f32 %v686, %v762
        %v827 = vsub.f32 %v690, %v763
        %v828 = vsub.f32 %v692, %v764
        %v829 = vsub.f32 %v696, %v765
        %v830 = vsub.f32 %v698, %v766
        %s831 = smul.u32 %s24, 256
        %s832 = sadd.s32 %s831, 0
        %v833 = vstv %s832
        %v834 = vadd.s32 %v282, %v833
        %v835 = vadd.s32 %v283, %v833
        %v836 = vadd.s32 %v284, %v833
        %v837 = vadd.s32 %v285, %v833
        %v838 = vadd.s32 %v286, %v833
        %v839 = vadd.s32 %v287, %v833
        %v840 = vadd.s32 %v288, %v833
        %v841 = vadd.s32 %v289, %v833
        %v842 = vadd.s32 %v290, %v833
        %v843 = vadd.s32 %v291, %v833
        %v844 = vadd.s32 %v292, %v833
        %v845 = vadd.s32 %v293, %v833
        %v846 = vadd.s32 %v294, %v833
        %v847 = vadd.s32 %v295, %v833
        %v848 = vadd.s32 %v296, %v833
        %v849 = vadd.s32 %v297, %v833
        %v850 = vadd.s32 %v298, %v833
        %v851 = vadd.s32 %v299, %v833
        %v852 = vadd.s32 %v300, %v833
        %v853 = vadd.s32 %v301, %v833
        %v854 = vadd.s32 %v302, %v833
        %v855 = vadd.s32 %v303, %v833
        %v856 = vadd.s32 %v304, %v833
        %v857 = vadd.s32 %v305, %v833
        %v858 = vadd.s32 %v306, %v833
        %v859 = vadd.s32 %v307, %v833
        %v860 = vadd.s32 %v308, %v833
        %v861 = vadd.s32 %v309, %v833
        %v862 = vadd.s32 %v310, %v833
        %v863 = vadd.s32 %v311, %v833
        %v864 = vadd.s32 %v312, %v833
        %v865 = vadd.s32 %v313, %v833
        %vm866 = vcmp.lt.s32.totalorder %v834, 500
        %vm867 = vcmp.lt.s32.totalorder %v835, 500
        %vm868 = vcmp.lt.s32.totalorder %v836, 500
        %vm869 = vcmp.lt.s32.totalorder %v837, 500
        %vm870 = vcmp.lt.s32.totalorder %v838, 500
        %vm871 = vcmp.lt.s32.totalorder %v839, 500
        %vm872 = vcmp.lt.s32.totalorder %v840, 500
        %vm873 = vcmp.lt.s32.totalorder %v841, 500
        %vm874 = vcmp.lt.s32.totalorder %v842, 500
        %vm875 = vcmp.lt.s32.totalorder %v843, 500
        %vm876 = vcmp.lt.s32.totalorder %v844, 500
        %vm877 = vcmp.lt.s32.totalorder %v845, 500
        %vm878 = vcmp.lt.s32.totalorder %v846, 500
        %vm879 = vcmp.lt.s32.totalorder %v847, 500
        %vm880 = vcmp.lt.s32.totalorder %v848, 500
        %vm881 = vcmp.lt.s32.totalorder %v849, 500
        %vm882 = vcmp.lt.s32.totalorder %v850, 500
        %vm883 = vcmp.lt.s32.totalorder %v851, 500
        %vm884 = vcmp.lt.s32.totalorder %v852, 500
        %vm885 = vcmp.lt.s32.totalorder %v853, 500
        %vm886 = vcmp.lt.s32.totalorder %v854, 500
        %vm887 = vcmp.lt.s32.totalorder %v855, 500
        %vm888 = vcmp.lt.s32.totalorder %v856, 500
        %vm889 = vcmp.lt.s32.totalorder %v857, 500
        %vm890 = vcmp.lt.s32.totalorder %v858, 500
        %vm891 = vcmp.lt.s32.totalorder %v859, 500
        %vm892 = vcmp.lt.s32.totalorder %v860, 500
        %vm893 = vcmp.lt.s32.totalorder %v861, 500
        %vm894 = vcmp.lt.s32.totalorder %v862, 500
        %vm895 = vcmp.lt.s32.totalorder %v863, 500
        %vm896 = vcmp.lt.s32.totalorder %v864, 500
        %vm897 = vcmp.lt.s32.totalorder %v865, 500
        %vm898 = vmand %vm866, %vm279
        %vm899 = vmand %vm866, %vm280
        %vm900 = vmand %vm867, %vm279
        %vm901 = vmand %vm867, %vm280
        %vm902 = vmand %vm868, %vm279
        %vm903 = vmand %vm868, %vm280
        %vm904 = vmand %vm869, %vm279
        %vm905 = vmand %vm869, %vm280
        %vm906 = vmand %vm870, %vm279
        %vm907 = vmand %vm870, %vm280
        %vm908 = vmand %vm871, %vm279
        %vm909 = vmand %vm871, %vm280
        %vm910 = vmand %vm872, %vm279
        %vm911 = vmand %vm872, %vm280
        %vm912 = vmand %vm873, %vm279
        %vm913 = vmand %vm873, %vm280
        %vm914 = vmand %vm874, %vm279
        %vm915 = vmand %vm874, %vm280
        %vm916 = vmand %vm875, %vm279
        %vm917 = vmand %vm875, %vm280
        %vm918 = vmand %vm876, %vm279
        %vm919 = vmand %vm876, %vm280
        %vm920 = vmand %vm877, %vm279
        %vm921 = vmand %vm877, %vm280
        %vm922 = vmand %vm878, %vm279
        %vm923 = vmand %vm878, %vm280
        %vm924 = vmand %vm879, %vm279
        %vm925 = vmand %vm879, %vm280
        %vm926 = vmand %vm880, %vm279
        %vm927 = vmand %vm880, %vm280
        %vm928 = vmand %vm881, %vm279
        %vm929 = vmand %vm881, %vm280
        %vm930 = vmand %vm882, %vm279
        %vm931 = vmand %vm882, %vm280
        %vm932 = vmand %vm883, %vm279
        %vm933 = vmand %vm883, %vm280
        %vm934 = vmand %vm884, %vm279
        %vm935 = vmand %vm884, %vm280
        %vm936 = vmand %vm885, %vm279
        %vm937 = vmand %vm885, %vm280
        %vm938 = vmand %vm886, %vm279
        %vm939 = vmand %vm886, %vm280
        %vm940 = vmand %vm887, %vm279
        %vm941 = vmand %vm887, %vm280
        %vm942 = vmand %vm888, %vm279
        %vm943 = vmand %vm888, %vm280
        %vm944 = vmand %vm889, %vm279
        %vm945 = vmand %vm889, %vm280
        %vm946 = vmand %vm890, %vm279
        %vm947 = vmand %vm890, %vm280
        %vm948 = vmand %vm891, %vm279
        %vm949 = vmand %vm891, %vm280
        %vm950 = vmand %vm892, %vm279
        %vm951 = vmand %vm892, %vm280
        %vm952 = vmand %vm893, %vm279
        %vm953 = vmand %vm893, %vm280
        %vm954 = vmand %vm894, %vm279
        %vm955 = vmand %vm894, %vm280
        %vm956 = vmand %vm895, %vm279
        %vm957 = vmand %vm895, %vm280
        %vm958 = vmand %vm896, %vm279
        %vm959 = vmand %vm896, %vm280
        %vm960 = vmand %vm897, %vm279
        %vm961 = vmand %vm897, %vm280
        %v962 = vsel %vm898, %v767, 0.0
        %v963 = vsel %vm899, %v768, 0.0
        %v964 = vsel %vm900, %v769, 0.0
        %v965 = vsel %vm901, %v770, 0.0
        %v966 = vsel %vm902, %v771, 0.0
        %v967 = vsel %vm903, %v772, 0.0
        %v968 = vsel %vm904, %v773, 0.0
        %v969 = vsel %vm905, %v774, 0.0
        %v970 = vsel %vm906, %v775, 0.0
        %v971 = vsel %vm907, %v776, 0.0
        %v972 = vsel %vm908, %v777, 0.0
        %v973 = vsel %vm909, %v778, 0.0
        %v974 = vsel %vm910, %v779, 0.0
        %v975 = vsel %vm911, %v780, 0.0
        %v976 = vsel %vm912, %v781, 0.0
        %v977 = vsel %vm913, %v782, 0.0
        %v978 = vsel %vm914, %v783, 0.0
        %v979 = vsel %vm915, %v784, 0.0
        %v980 = vsel %vm916, %v785, 0.0
        %v981 = vsel %vm917, %v786, 0.0
        %v982 = vsel %vm918, %v787, 0.0
        %v983 = vsel %vm919, %v788, 0.0
        %v984 = vsel %vm920, %v789, 0.0
        %v985 = vsel %vm921, %v790, 0.0
        %v986 = vsel %vm922, %v791, 0.0
        %v987 = vsel %vm923, %v792, 0.0
        %v988 = vsel %vm924, %v793, 0.0
        %v989 = vsel %vm925, %v794, 0.0
        %v990 = vsel %vm926, %v795, 0.0
        %v991 = vsel %vm927, %v796, 0.0
        %v992 = vsel %vm928, %v797, 0.0
        %v993 = vsel %vm929, %v798, 0.0
        %v994 = vsel %vm930, %v799, 0.0
        %v995 = vsel %vm931, %v800, 0.0
        %v996 = vsel %vm932, %v801, 0.0
        %v997 = vsel %vm933, %v802, 0.0
        %v998 = vsel %vm934, %v803, 0.0
        %v999 = vsel %vm935, %v804, 0.0
        %v1000 = vsel %vm936, %v805, 0.0
        %v1001 = vsel %vm937, %v806, 0.0
        %v1002 = vsel %vm938, %v807, 0.0
        %v1003 = vsel %vm939, %v808, 0.0
        %v1004 = vsel %vm940, %v809, 0.0
        %v1005 = vsel %vm941, %v810, 0.0
        %v1006 = vsel %vm942, %v811, 0.0
        %v1007 = vsel %vm943, %v812, 0.0
        %v1008 = vsel %vm944, %v813, 0.0
        %v1009 = vsel %vm945, %v814, 0.0
        %v1010 = vsel %vm946, %v815, 0.0
        %v1011 = vsel %vm947, %v816, 0.0
        %v1012 = vsel %vm948, %v817, 0.0
        %v1013 = vsel %vm949, %v818, 0.0
        %v1014 = vsel %vm950, %v819, 0.0
        %v1015 = vsel %vm951, %v820, 0.0
        %v1016 = vsel %vm952, %v821, 0.0
        %v1017 = vsel %vm953, %v822, 0.0
        %v1018 = vsel %vm954, %v823, 0.0
        %v1019 = vsel %vm955, %v824, 0.0
        %v1020 = vsel %vm956, %v825, 0.0
        %v1021 = vsel %vm957, %v826, 0.0
        %v1022 = vsel %vm958, %v827, 0.0
        %v1023 = vsel %vm959, %v828, 0.0
        %v1024 = vsel %vm960, %v829, 0.0
        %v1025 = vsel %vm961, %v830, 0.0
        %v1026 = vmul.f32 %v962, %v962
        %v1027 = vmul.f32 %v963, %v963
        %v1028 = vmul.f32 %v964, %v964
        %v1029 = vmul.f32 %v965, %v965
        %v1030 = vmul.f32 %v966, %v966
        %v1031 = vmul.f32 %v967, %v967
        %v1032 = vmul.f32 %v968, %v968
        %v1033 = vmul.f32 %v969, %v969
        %v1034 = vmul.f32 %v970, %v970
        %v1035 = vmul.f32 %v971, %v971
        %v1036 = vmul.f32 %v972, %v972
        %v1037 = vmul.f32 %v973, %v973
        %v1038 = vmul.f32 %v974, %v974
        %v1039 = vmul.f32 %v975, %v975
        %v1040 = vmul.f32 %v976, %v976
        %v1041 = vmul.f32 %v977, %v977
        %v1042 = vmul.f32 %v978, %v978
        %v1043 = vmul.f32 %v979, %v979
        %v1044 = vmul.f32 %v980, %v980
        %v1045 = vmul.f32 %v981, %v981
        %v1046 = vmul.f32 %v982, %v982
        %v1047 = vmul.f32 %v983, %v983
        %v1048 = vmul.f32 %v984, %v984
        %v1049 = vmul.f32 %v985, %v985
        %v1050 = vmul.f32 %v986, %v986
        %v1051 = vmul.f32 %v987, %v987
        %v1052 = vmul.f32 %v988, %v988
        %v1053 = vmul.f32 %v989, %v989
        %v1054 = vmul.f32 %v990, %v990
        %v1055 = vmul.f32 %v991, %v991
        %v1056 = vmul.f32 %v992, %v992
        %v1057 = vmul.f32 %v993, %v993
        %v1058 = vmul.f32 %v994, %v994
        %v1059 = vmul.f32 %v995, %v995
        %v1060 = vmul.f32 %v996, %v996
        %v1061 = vmul.f32 %v997, %v997
        %v1062 = vmul.f32 %v998, %v998
        %v1063 = vmul.f32 %v999, %v999
        %v1064 = vmul.f32 %v1000, %v1000
        %v1065 = vmul.f32 %v1001, %v1001
        %v1066 = vmul.f32 %v1002, %v1002
        %v1067 = vmul.f32 %v1003, %v1003
        %v1068 = vmul.f32 %v1004, %v1004
        %v1069 = vmul.f32 %v1005, %v1005
        %v1070 = vmul.f32 %v1006, %v1006
        %v1071 = vmul.f32 %v1007, %v1007
        %v1072 = vmul.f32 %v1008, %v1008
        %v1073 = vmul.f32 %v1009, %v1009
        %v1074 = vmul.f32 %v1010, %v1010
        %v1075 = vmul.f32 %v1011, %v1011
        %v1076 = vmul.f32 %v1012, %v1012
        %v1077 = vmul.f32 %v1013, %v1013
        %v1078 = vmul.f32 %v1014, %v1014
        %v1079 = vmul.f32 %v1015, %v1015
        %v1080 = vmul.f32 %v1016, %v1016
        %v1081 = vmul.f32 %v1017, %v1017
        %v1082 = vmul.f32 %v1018, %v1018
        %v1083 = vmul.f32 %v1019, %v1019
        %v1084 = vmul.f32 %v1020, %v1020
        %v1085 = vmul.f32 %v1021, %v1021
        %v1086 = vmul.f32 %v1022, %v1022
        %v1087 = vmul.f32 %v1023, %v1023
        %v1088 = vmul.f32 %v1024, %v1024
        %v1089 = vmul.f32 %v1025, %v1025
        %v1090 = vadd.f32 %v1026, %v1028
        %v1091 = vadd.f32 %v1090, %v1030
        %v1092 = vadd.f32 %v1091, %v1032
        %v1093 = vadd.f32 %v1092, %v1034
        %v1094 = vadd.f32 %v1093, %v1036
        %v1095 = vadd.f32 %v1094, %v1038
        %v1096 = vadd.f32 %v1095, %v1040
        %v1097 = vadd.f32 %v1096, %v1042
        %v1098 = vadd.f32 %v1097, %v1044
        %v1099 = vadd.f32 %v1098, %v1046
        %v1100 = vadd.f32 %v1099, %v1048
        %v1101 = vadd.f32 %v1100, %v1050
        %v1102 = vadd.f32 %v1101, %v1052
        %v1103 = vadd.f32 %v1102, %v1054
        %v1104 = vadd.f32 %v1103, %v1056
        %v1105 = vadd.f32 %v1104, %v1058
        %v1106 = vadd.f32 %v1105, %v1060
        %v1107 = vadd.f32 %v1106, %v1062
        %v1108 = vadd.f32 %v1107, %v1064
        %v1109 = vadd.f32 %v1108, %v1066
        %v1110 = vadd.f32 %v1109, %v1068
        %v1111 = vadd.f32 %v1110, %v1070
        %v1112 = vadd.f32 %v1111, %v1072
        %v1113 = vadd.f32 %v1112, %v1074
        %v1114 = vadd.f32 %v1113, %v1076
        %v1115 = vadd.f32 %v1114, %v1078
        %v1116 = vadd.f32 %v1115, %v1080
        %v1117 = vadd.f32 %v1116, %v1082
        %v1118 = vadd.f32 %v1117, %v1084
        %v1119 = vadd.f32 %v1118, %v1086
        %v1120 = vadd.f32 %v1119, %v1088
        %v1121 = vadd.f32 %v1027, %v1029
        %v1122 = vadd.f32 %v1121, %v1031
        %v1123 = vadd.f32 %v1122, %v1033
        %v1124 = vadd.f32 %v1123, %v1035
        %v1125 = vadd.f32 %v1124, %v1037
        %v1126 = vadd.f32 %v1125, %v1039
        %v1127 = vadd.f32 %v1126, %v1041
        %v1128 = vadd.f32 %v1127, %v1043
        %v1129 = vadd.f32 %v1128, %v1045
        %v1130 = vadd.f32 %v1129, %v1047
        %v1131 = vadd.f32 %v1130, %v1049
        %v1132 = vadd.f32 %v1131, %v1051
        %v1133 = vadd.f32 %v1132, %v1053
        %v1134 = vadd.f32 %v1133, %v1055
        %v1135 = vadd.f32 %v1134, %v1057
        %v1136 = vadd.f32 %v1135, %v1059
        %v1137 = vadd.f32 %v1136, %v1061
        %v1138 = vadd.f32 %v1137, %v1063
        %v1139 = vadd.f32 %v1138, %v1065
        %v1140 = vadd.f32 %v1139, %v1067
        %v1141 = vadd.f32 %v1140, %v1069
        %v1142 = vadd.f32 %v1141, %v1071
        %v1143 = vadd.f32 %v1142, %v1073
        %v1144 = vadd.f32 %v1143, %v1075
        %v1145 = vadd.f32 %v1144, %v1077
        %v1146 = vadd.f32 %v1145, %v1079
        %v1147 = vadd.f32 %v1146, %v1081
        %v1148 = vadd.f32 %v1147, %v1083
        %v1149 = vadd.f32 %v1148, %v1085
        %v1150 = vadd.f32 %v1149, %v1087
        %v1151 = vadd.f32 %v1150, %v1089
        %v1152 = vadd.f32 %v1120, 0.0
        %v1153 = vadd.f32 %v1151, 0.0
        %v1154 = vld [vmem:[%s244] sm:$0xff]
        %v1155 = vld [vmem:[%s244 + $0x8] sm:$0xff]
        %v1156 = vadd.f32 %v1154, %v1152
        %v1157 = vadd.f32 %v1155, %v1153
        %1158 = vst [vmem:[%s244] sm:$0xff] %v1156
        %1159 = vst [vmem:[%s244 + $0x8] sm:$0xff] %v1157
        %s1160 = sand.u32 %s120, 1
        %s1161 = scalar_lea.sflag [#allocation4], %s1160
        %s1162 = sand.u32 %s120, 1
        %s1163 = smul.addr %s1162, 16
        %s1164 = scalar_lea.vmem [#allocation5], %s1163
        // Predicated region
        $region41: #{tpu_custom_call.1} parent=31 // pred_check
          %p1165 = pneg %p130
        $region42: #{tpu_custom_call.1} parent=31 // pred_check_branch
          %1167 = sbr.rel (%p1165) target = $region44
        $region43: #{tpu_custom_call.1} parent=31 // pred_region
          %s1169 = ssub.s32 256, 256
          %1170 = vsyncadd %s1161, %s1169
          %s1171 = smul.addr %s24, 2
          %s1172 = smul.addr %s1171, 128
          %s1173 = scalar_lea.hbm %s3, %s1172
          %s1175 = sshll.u32 %s1164, 4
          %s1176 = int_to_ptr.vmem [resolvable:$true] %s1175
          %1178 = dma.vmem_to_hbm [thread:$0]  %s1176, 256, %s1173, %s1161
        $region44: #{tpu_custom_call.1} parent=31 // pred_fallthru
          _
      $region32: #{tpu_custom_call.1} parent=5 // pred_fallthru
        _
      %p1179 = scmp.le.s32.totalorder 2, %s15
      // Predicated region
      $region45: #{tpu_custom_call.1} parent=5 // pred_check
        %p1180 = pneg %p1179
      $region46: #{tpu_custom_call.1} parent=5 // pred_check_branch
        %1182 = sbr.rel (%p1180) target = $region48
      $region47: #{tpu_custom_call.1} parent=5 // pred_region
        %s1183 = ssub.s32 %s15, 2
        // Predicated region
        $region49: #{tpu_custom_call.1} parent=47 // pred_check
          %p1184 = pneg %p136
        $region50: #{tpu_custom_call.1} parent=47 // pred_check_branch
          %1186 = sbr.rel (%p1184) target = $region52
        $region51: #{tpu_custom_call.1} parent=47 // pred_region
          %s1187 = sand.u32 %s121, 1
          %s1188 = scalar_lea.sflag [#allocation4], %s1187
          %s1189 = sand.u32 %s121, 1
          %s1190 = smul.addr %s1189, 16
          %s1191 = scalar_lea.vmem [#allocation5], %s1190
          %1192 = dma.done %s1188, 256
        $region52: #{tpu_custom_call.1} parent=47 // pred_fallthru
          _
      $region48: #{tpu_custom_call.1} parent=5 // pred_fallthru
        _
    $region6: #{tpu_custom_call.1} parent=1 // loop_footer
      %s19 = sadd.s32 1, %s15
    $region7: #{tpu_custom_call.1} parent=1 // loop_footer_branch
      %14 = sbr.rel target = $region3
    $region8: #{tpu_custom_call.1} parent=1 // loop_exit
      _
    %1193 = vsyncpa [#allocation3], 1
    %s1194 = scalar_lea.sflag [#allocation3], 1
    %1195 = vsyncpa %s1194, 1
    %1196 = vsyncpa [#allocation4], 1
    %s1197 = scalar_lea.sflag [#allocation4], 1
    %1198 = vsyncpa %s1197, 1

</llo_original>
